<compile_context>
chip_gen: v7x
topology: tpu7x:2x2x1
jax: 0.10.0
libtpu: 0.0.40
codegen_flags: <defaults>
</compile_context>

<pallas_src>
import functools
import numpy as np
import jax
import jax.numpy as jnp
from jax.experimental import pallas as pl
from jax.experimental.pallas import tpu as pltpu

_NEG_SLOPE = 0.2  # nn.LeakyReLU(0.2)


def _lrelu(x):
    return jnp.where(x > 0, x, _NEG_SLOPE * x)


# ----------------------------------------------------------------------------
# In-kernel helpers.
# ----------------------------------------------------------------------------
def _reflect_neighbor_rows(a, H):
    """a: (M, C) f32 with M = B*H, row i = image b, image-row h = i % H.

    Returns (a_prev, a_next) with a_prev[i] = a[b*H + reflect(h-1)] and
    a_next[i] = a[b*H + reflect(h+1)], built from two XLU sublane rolls plus a
    one-row VPU boundary fix.  The cyclic wrap of the rolls only shows up at
    h == 0 / h == H-1, exactly where the fix-up selects the other roll, so the
    result never mixes rows across images.
    """
    M = a.shape[0]
    up = pltpu.roll(a, shift=1, axis=0)        # up[i] = a[i-1 mod M]
    dn = pltpu.roll(a, shift=M - 1, axis=0)    # dn[i] = a[i+1 mod M]  (== shift -1)
    h = jax.lax.broadcasted_iota(jnp.int32, (M, 1), 0) % H
    a_prev = jnp.where(h == 0, dn, up)         # reflect(h-1): h==0  -> row h+1
    a_next = jnp.where(h == H - 1, up, dn)     # reflect(h+1): h==H-1-> row h-1
    return a_prev, a_next


def _banded_conv3x3(a_f32, m_ref, b_ref, H):
    """3x3 reflect-padded conv as ONE K = 3*W*Cin bf16 MXU matmul, f32 accum.

    a_f32 : (M, W*Cin) activated, UNPADDED input (M = B_TILE*H rows).
    m_ref : (3*W*Cin, W*Cout) bf16 banded weights, row-blocks ordered
            [dy=0 (prev row), dy=1 (same row), dy=2 (next row)].
    b_ref : (1, W*Cout) f32 bias (per-channel bias tiled along W).
    """
    a_prev, a_next = _reflect_neighbor_rows(a_f32, H)
    a_cat = jnp.concatenate([a_prev, a_f32, a_next], axis=-1).astype(jnp.bfloat16)
    out = jnp.dot(a_cat, m_ref[...], preferred_element_type=jnp.float32)
    return out + b_ref[...]


def _res_block_body(x_ref, m0_ref, b0_ref, m1_ref, b1_ref, out_ref, s_ref, H):
    B, _, WCin = x_ref.shape
    # Merge (B_TILE, H) -> M rows; free relayout when H is a multiple of 8.
    x = x_ref[...].reshape(B * H, WCin).astype(jnp.float32)

    # conv_0: lrelu -> reflect-pad + 3x3 conv + b0 (hidden y stays in vregs/VMEM)
    y = _banded_conv3x3(_lrelu(x), m0_ref, b0_ref, H)
    # conv_1: lrelu -> reflect-pad + 3x3 conv + b1
    dx = _banded_conv3x3(_lrelu(y), m1_ref, b1_ref, H)

    if s_ref is None:
        xs = x                                          # exact identity residual
    else:
        xs = jnp.dot(x.astype(jnp.bfloat16), s_ref[...],
                     preferred_element_type=jnp.float32)  # learned 1x1 shortcut

    out = (xs + dx).astype(out_ref.dtype)
    out_ref[...] = out.reshape(B, H, out.shape[-1])     # lane-dense store


def _res_block_kernel_learned(x_ref, m0_ref, b0_ref, m1_ref, b1_ref, s_ref,
                              out_ref, *, H):
    _res_block_body(x_ref, m0_ref, b0_ref, m1_ref, b1_ref, out_ref, s_ref, H)


def _res_block_kernel_identity(x_ref, m0_ref, b0_ref, m1_ref, b1_ref,
                               out_ref, *, H):
    _res_block_body(x_ref, m0_ref, b0_ref, m1_ref, b1_ref, out_ref, None, H)


# ----------------------------------------------------------------------------
# Host-side weight preprocessing (numpy + jnp; cached per-parameter in a model).
# ----------------------------------------------------------------------------
def _banded_weights(w, W):
    """Fold horizontal taps + horizontal reflect padding into the conv weights.

    w: (3, 3, Cin, Cout) HWIO  ->  (3*W*Cin, W*Cout) bf16, with row-block dy in
    {prev, same, next} order, where
      M[dy][wi*Cin+c, wo*Cout+o] = sum_{dx : reflect(wo+dx-1)==wi} w[dy, dx, c, o].
    """
    Cin, Cout = w.shape[2], w.shape[3]
    t = np.zeros((3, W, W), np.float32)          # t[dx, w_in, w_out]
    wo = np.arange(W)
    for dx in range(3):                          # pad=1 -> offsets -1, 0, +1
        wi = np.abs(wo + dx - 1)                 # reflect at the low edge
        wi = np.where(wi >= W, 2 * W - 2 - wi, wi)  # reflect at the high edge
        t[dx, wi, wo] = 1.0
    m = jnp.einsum("xiw,dxco->dicwo", jnp.asarray(t), w.astype(jnp.float32))
    return m.reshape(3 * W * Cin, W * Cout).astype(jnp.bfloat16)


def _shortcut_weights(ws, W):
    """1x1 conv weight (Cin, Cout) -> block-diagonal (W*Cin, W*Cout) bf16."""
    Cin, Cout = ws.shape
    s = jnp.einsum("iw,co->icwo", jnp.eye(W, dtype=jnp.float32),
                   ws.astype(jnp.float32))
    return s.reshape(W * Cin, W * Cout).astype(jnp.bfloat16)


def _choose_batch_tile(N, H):
    """M = b_tile*H ~ 256 rows fills the MXU; keep grid >= 2 for v7x's 2 TCs."""
    b = min(N, max(1, 256 // max(H, 1)))
    if N > 1:
        b = min(b, -(-N // 2))
    return max(b, 1)


def _const_spec(shape):
    """Full-array block, constant index, single-buffered (never changes on grid)."""
    nd = len(shape)
    return pl.BlockSpec(shape, lambda n: (0,) * nd, pipeline_mode=pl.Buffered(1))


# ----------------------------------------------------------------------------
# Public wrapper.
# ----------------------------------------------------------------------------
def act_first_res_block(x, w0, b0, w1, b1, ws=None):
    """x: (N, H, W, fin) NHWC; w0/w1: (3,3,cin,cout) HWIO; ws: (fin,fout) or None."""
    N, H, W, Cin = x.shape
    Chid = w0.shape[-1]
    Cout = w1.shape[-1]
    assert H >= 2 and W >= 2, "reflect padding of 1 needs spatial dims >= 2"
    learned = ws is not None
    if not learned:
        assert Cin == Cout, "identity shortcut requires fin == fout"

    itemsize = jnp.dtype(x.dtype).itemsize

    # Weight preprocessing (folded reflect padding + bf16 pre-cast).
    m0 = _banded_weights(w0, W)                           # (3*W*Cin,  W*Chid) bf16
    m1 = _banded_weights(w1, W)                           # (3*W*Chid, W*Cout) bf16
    b0r = jnp.tile(b0.astype(jnp.float32), W).reshape(1, W * Chid)
    b1r = jnp.tile(b1.astype(jnp.float32), W).reshape(1, W * Cout)

    x2 = x.reshape(N, H, W * Cin)                         # lane-dense rows (free)

    b_tile = _choose_batch_tile(N, H)
    n_blk = pl.cdiv(N, b_tile)
    N_pad = n_blk * b_tile
    if N_pad != N:
        x2 = jnp.pad(x2, ((0, N_pad - N), (0, 0), (0, 0)))

    in_specs = [
        pl.BlockSpec((b_tile, H, W * Cin), lambda n: (n, 0, 0)),
        _const_spec((3 * W * Cin, W * Chid)),
        _const_spec((1, W * Chid)),
        _const_spec((3 * W * Chid, W * Cout)),
        _const_spec((1, W * Cout)),
    ]
    args = [x2, m0, b0r, m1, b1r]
    if learned:
        s = _shortcut_weights(ws, W)                      # (W*Cin, W*Cout) bf16
        in_specs.append(_const_spec((W * Cin, W * Cout)))
        args.append(s)
        kernel = functools.partial(_res_block_kernel_learned, H=H)
    else:
        kernel = functools.partial(_res_block_kernel_identity, H=H)

    flops = 2 * N_pad * H * (3 * W * Cin * W * Chid
                             + 3 * W * Chid * W * Cout
                             + (W * Cin * W * Cout if learned else 0))
    bytes_accessed = (N_pad * H * W * Cin * itemsize          # x
                      + N_pad * H * W * Cout * itemsize       # out
                      + int(m0.size) * 2 + int(m1.size) * 2   # bf16 weights
                      + int(b0r.size) * 4 + int(b1r.size) * 4
                      + (W * Cin * W * Cout * 2 if learned else 0))
    # NOTE: when W*Cout < 128 (e.g. the fin==fout test case: 64 lanes) output
    # stores are masked vst.msk; lane-dense stores fully pay off once
    # W*Cout is a multiple of 128.
    out2 = pl.pallas_call(
        kernel,
        out_shape=jax.ShapeDtypeStruct((N_pad, H, W * Cout), x.dtype),
        grid=(n_blk,),
        in_specs=in_specs,
        out_specs=pl.BlockSpec((b_tile, H, W * Cout), lambda n: (n, 0, 0)),
        compiler_params=pltpu.CompilerParams(
            dimension_semantics=("parallel",),
            vmem_limit_bytes=64 * 1024 * 1024),
        cost_estimate=pl.CostEstimate(flops=int(flops), transcendentals=0,
                                      bytes_accessed=int(bytes_accessed)),
    )(*args)

    return out2[:N].reshape(N, H, W, Cout)


# ----------------------------------------------------------------------------
# Pure-JAX reference (independent path, f32 throughout, for validation).
# ----------------------------------------------------------------------------
def _ref_forward(x, w0, b0, w1, b1, ws):
    def conv_block(a, w, b):
        a = _lrelu(a)
        a = jnp.pad(a, ((0, 0), (1, 1), (1, 1), (0, 0)), mode="reflect")
        y = jax.lax.conv_general_dilated(
            a, w, window_strides=(1, 1), padding="VALID",
            dimension_numbers=("NHWC", "HWIO", "NHWC"))
        return y + b
    dx = conv_block(x, w0, b0)
    dx = conv_block(dx, w1, b1)
    x_s = jnp.einsum("nhwc,cd->nhwd", x, ws) if ws is not None else x
    return x_s + dx


if __name__ == "__main__":
    key = jax.random.PRNGKey(0)
    keys = jax.random.split(key, 11)
    (kx, k0, kb0, k1, kb1, ks, kx2, k02, kb02, k12, kb12) = keys

    # bf16 MXU operands (f32 accumulation) -> expect ~1e-2-scale abs error vs
    # the pure-f32 reference; tolerance chosen accordingly (still catches any
    # indexing / reflect-padding / tap-ordering bug, which would be O(0.1)).
    TOL = 5e-2

    # Case 1: fin=4, fout=8 -> learned 1x1 shortcut; fhid = min(fin, fout) = 4.
    N, H, W = 2, 16, 16
    fin, fout = 4, 8
    fhid = min(fin, fout)

    x = jax.random.normal(kx, (N, H, W, fin), dtype=jnp.float32)
    w0 = 0.1 * jax.random.normal(k0, (3, 3, fin, fhid), dtype=jnp.float32)
    b0 = 0.1 * jax.random.normal(kb0, (fhid,), dtype=jnp.float32)
    w1 = 0.1 * jax.random.normal(k1, (3, 3, fhid, fout), dtype=jnp.float32)
    b1 = 0.1 * jax.random.normal(kb1, (fout,), dtype=jnp.float32)
    ws = 0.1 * jax.random.normal(ks, (fin, fout), dtype=jnp.float32)

    out = jax.block_until_ready(act_first_res_block(x, w0, b0, w1, b1, ws))
    ref = _ref_forward(x, w0, b0, w1, b1, ws)
    assert out.shape == (N, H, W, fout)
    assert jnp.allclose(out, ref, atol=TOL, rtol=TOL), (
        "learned-shortcut mismatch: max abs err = %g"
        % float(jnp.max(jnp.abs(out - ref))))

    # Case 2: fin == fout = 4 -> identity shortcut (no conv_s in the module).
    fin2 = fout2 = 4
    x_b = jax.random.normal(kx2, (N, H, W, fin2), dtype=jnp.float32)
    w0_b = 0.1 * jax.random.normal(k02, (3, 3, fin2, fin2), dtype=jnp.float32)
    b0_b = 0.1 * jax.random.normal(kb02, (fin2,), dtype=jnp.float32)
    w1_b = 0.1 * jax.random.normal(k12, (3, 3, fin2, fout2), dtype=jnp.float32)
    b1_b = 0.1 * jax.random.normal(kb12, (fout2,), dtype=jnp.float32)

    out_b = jax.block_until_ready(
        act_first_res_block(x_b, w0_b, b0_b, w1_b, b1_b, None))
    ref_b = _ref_forward(x_b, w0_b, b0_b, w1_b, b1_b, None)
    assert jnp.allclose(out_b, ref_b, atol=TOL, rtol=TOL), (
        "identity-shortcut mismatch: max abs err = %g"
        % float(jnp.max(jnp.abs(out_b - ref_b))))

    print("KERNEL_OK")
</pallas_src>

<mosaic_0001>
module attributes {stable_mosaic.version = 11 : i64} {
  func.func @_res_block_kernel_learned(%arg0: i32, %arg1: memref<1x16x64xf32, #tpu.memory_space<vmem>>, %arg2: memref<192x64xbf16, #tpu.memory_space<vmem>>, %arg3: memref<1x64xf32, #tpu.memory_space<vmem>>, %arg4: memref<192x128xbf16, #tpu.memory_space<vmem>>, %arg5: memref<1x128xf32, #tpu.memory_space<vmem>>, %arg6: memref<64x128xbf16, #tpu.memory_space<vmem>>, %arg7: memref<1x16x128xf32, #tpu.memory_space<vmem>>) attributes {dimension_semantics = [#tpu.dimension_semantics<parallel>], iteration_bounds = array<i64: 2>, scalar_prefetch = 0 : i64, scratch_operands = 0 : i64, tpu.core_type = #tpu.core_type<tc>, window_params = [{transform_indices = @transform_0, window_bounds = array<i64: 1, 16, 64>}, {pipeline_mode = #tpu.pipeline_mode<synchronous>, transform_indices = @transform_1, window_bounds = array<i64: 192, 64>}, {pipeline_mode = #tpu.pipeline_mode<synchronous>, transform_indices = @transform_2, window_bounds = array<i64: 1, 64>}, {pipeline_mode = #tpu.pipeline_mode<synchronous>, transform_indices = @transform_3, window_bounds = array<i64: 192, 128>}, {pipeline_mode = #tpu.pipeline_mode<synchronous>, transform_indices = @transform_4, window_bounds = array<i64: 1, 128>}, {pipeline_mode = #tpu.pipeline_mode<synchronous>, transform_indices = @transform_5, window_bounds = array<i64: 64, 128>}, {transform_indices = @transform_6, window_bounds = array<i64: 1, 16, 128>}]} {
    %c0 = arith.constant 0 : index
    %c0_0 = arith.constant 0 : index
    %c0_1 = arith.constant 0 : index
    %0 = vector.load %arg1[%c0, %c0_0, %c0_1] : memref<1x16x64xf32, #tpu.memory_space<vmem>>, vector<1x16x64xf32>
    %1 = vector.shape_cast %0 : vector<1x16x64xf32> to vector<16x64xf32>
    %cst = arith.constant 0.000000e+00 : f32
    %2 = vector.broadcast %cst : f32 to vector<16x64xf32>
    %3 = arith.cmpf ogt, %1, %2 : vector<16x64xf32>
    %cst_2 = arith.constant 2.000000e-01 : f32
    %4 = vector.broadcast %cst_2 : f32 to vector<16x64xf32>
    %5 = arith.mulf %4, %1 : vector<16x64xf32>
    %6 = arith.select %3, %1, %5 : vector<16x64xi1>, vector<16x64xf32>
    %c1_i32 = arith.constant 1 : i32
    %7 = tpu.dynamic_rotate %6 by %c1_i32 dim 0 : vector<16x64xf32>, i32 -> vector<16x64xf32>
    %c15_i32 = arith.constant 15 : i32
    %8 = tpu.dynamic_rotate %6 by %c15_i32 dim 0 : vector<16x64xf32>, i32 -> vector<16x64xf32>
    %9 = tpu.iota {dimensions = array<i32: 0>} : vector<16x1xi32>
    %c16_i32 = arith.constant 16 : i32
    %c0_i32 = arith.constant 0 : i32
    %10 = arith.cmpi eq, %c16_i32, %c0_i32 : i32
    %c1_i32_3 = arith.constant 1 : i32
    %11 = arith.select %10, %c1_i32_3, %c16_i32 : i32
    %12 = vector.broadcast %11 : i32 to vector<16x1xi32>
    %13 = arith.remsi %9, %12 : vector<16x1xi32>
    %c0_i32_4 = arith.constant 0 : i32
    %14 = vector.broadcast %c0_i32_4 : i32 to vector<16x1xi32>
    %15 = arith.cmpi ne, %13, %14 : vector<16x1xi32>
    %c0_i32_5 = arith.constant 0 : i32
    %16 = vector.broadcast %c0_i32_5 : i32 to vector<16x1xi32>
    %17 = arith.cmpi slt, %13, %16 : vector<16x1xi32>
    %c0_i32_6 = arith.constant 0 : i32
    %18 = arith.cmpi slt, %11, %c0_i32_6 : i32
    %19 = vector.broadcast %18 : i1 to vector<16x1xi1>
    %20 = vector.broadcast %19 : vector<16x1xi1> to vector<16x1xi1>
    %21 = arith.xori %17, %20 : vector<16x1xi1>
    %22 = arith.andi %21, %15 : vector<16x1xi1>
    %23 = vector.broadcast %11 : i32 to vector<16x1xi32>
    %24 = arith.addi %13, %23 : vector<16x1xi32>
    %25 = arith.select %22, %24, %13 : vector<16x1xi1>, vector<16x1xi32>
    %c0_i32_7 = arith.constant 0 : i32
    %26 = vector.broadcast %c0_i32_7 : i32 to vector<16x1xi32>
    %27 = arith.cmpi eq, %25, %26 : vector<16x1xi32>
    %28 = vector.shape_cast %27 : vector<16x1xi1> to vector<16x1xi1>
    %29 = vector.broadcast %28 : vector<16x1xi1> to vector<16x64xi1>
    %30 = arith.select %29, %8, %7 : vector<16x64xi1>, vector<16x64xf32>
    %c15_i32_8 = arith.constant 15 : i32
    %31 = vector.broadcast %c15_i32_8 : i32 to vector<16x1xi32>
    %32 = arith.cmpi eq, %25, %31 : vector<16x1xi32>
    %33 = vector.shape_cast %32 : vector<16x1xi1> to vector<16x1xi1>
    %34 = vector.broadcast %33 : vector<16x1xi1> to vector<16x64xi1>
    %35 = arith.select %34, %7, %8 : vector<16x64xi1>, vector<16x64xf32>
    %36 = tpu.concatenate %30, %6, %35 in 1 : vector<16x64xf32>, vector<16x64xf32>, vector<16x64xf32> -> vector<16x192xf32>
    %37 = arith.truncf %36 : vector<16x192xf32> to vector<16x192xbf16>
    %c0_9 = arith.constant 0 : index
    %c0_10 = arith.constant 0 : index
    %38 = vector.load %arg2[%c0_9, %c0_10] : memref<192x64xbf16, #tpu.memory_space<vmem>>, vector<192x64xbf16>
    %cst_11 = arith.constant dense<0.000000e+00> : vector<16x64xf32>
    %39 = tpu.matmul %37, %38, %cst_11 {dimension_numbers = #tpu.dot_dimension_numbers<[1], [0], [0], [1], [0, 0, 1, 1], [], []>} : vector<16x192xbf16>, vector<192x64xbf16>, vector<16x64xf32> -> vector<16x64xf32>
    %c0_12 = arith.constant 0 : index
    %c0_13 = arith.constant 0 : index
    %40 = vector.load %arg3[%c0_12, %c0_13] : memref<1x64xf32, #tpu.memory_space<vmem>>, vector<1x64xf32>
    %41 = vector.broadcast %40 : vector<1x64xf32> to vector<16x64xf32>
    %42 = arith.addf %39, %41 : vector<16x64xf32>
    %cst_14 = arith.constant 0.000000e+00 : f32
    %43 = vector.broadcast %cst_14 : f32 to vector<16x64xf32>
    %44 = arith.cmpf ogt, %42, %43 : vector<16x64xf32>
    %cst_15 = arith.constant 2.000000e-01 : f32
    %45 = vector.broadcast %cst_15 : f32 to vector<16x64xf32>
    %46 = arith.mulf %45, %42 : vector<16x64xf32>
    %47 = arith.select %44, %42, %46 : vector<16x64xi1>, vector<16x64xf32>
    %c1_i32_16 = arith.constant 1 : i32
    %48 = tpu.dynamic_rotate %47 by %c1_i32_16 dim 0 : vector<16x64xf32>, i32 -> vector<16x64xf32>
    %c15_i32_17 = arith.constant 15 : i32
    %49 = tpu.dynamic_rotate %47 by %c15_i32_17 dim 0 : vector<16x64xf32>, i32 -> vector<16x64xf32>
    %50 = tpu.iota {dimensions = array<i32: 0>} : vector<16x1xi32>
    %c16_i32_18 = arith.constant 16 : i32
    %c0_i32_19 = arith.constant 0 : i32
    %51 = arith.cmpi eq, %c16_i32_18, %c0_i32_19 : i32
    %c1_i32_20 = arith.constant 1 : i32
    %52 = arith.select %51, %c1_i32_20, %c16_i32_18 : i32
    %53 = vector.broadcast %52 : i32 to vector<16x1xi32>
    %54 = arith.remsi %50, %53 : vector<16x1xi32>
    %c0_i32_21 = arith.constant 0 : i32
    %55 = vector.broadcast %c0_i32_21 : i32 to vector<16x1xi32>
    %56 = arith.cmpi ne, %54, %55 : vector<16x1xi32>
    %c0_i32_22 = arith.constant 0 : i32
    %57 = vector.broadcast %c0_i32_22 : i32 to vector<16x1xi32>
    %58 = arith.cmpi slt, %54, %57 : vector<16x1xi32>
    %c0_i32_23 = arith.constant 0 : i32
    %59 = arith.cmpi slt, %52, %c0_i32_23 : i32
    %60 = vector.broadcast %59 : i1 to vector<16x1xi1>
    %61 = vector.broadcast %60 : vector<16x1xi1> to vector<16x1xi1>
    %62 = arith.xori %58, %61 : vector<16x1xi1>
    %63 = arith.andi %62, %56 : vector<16x1xi1>
    %64 = vector.broadcast %52 : i32 to vector<16x1xi32>
    %65 = arith.addi %54, %64 : vector<16x1xi32>
    %66 = arith.select %63, %65, %54 : vector<16x1xi1>, vector<16x1xi32>
    %c0_i32_24 = arith.constant 0 : i32
    %67 = vector.broadcast %c0_i32_24 : i32 to vector<16x1xi32>
    %68 = arith.cmpi eq, %66, %67 : vector<16x1xi32>
    %69 = vector.shape_cast %68 : vector<16x1xi1> to vector<16x1xi1>
    %70 = vector.broadcast %69 : vector<16x1xi1> to vector<16x64xi1>
    %71 = arith.select %70, %49, %48 : vector<16x64xi1>, vector<16x64xf32>
    %c15_i32_25 = arith.constant 15 : i32
    %72 = vector.broadcast %c15_i32_25 : i32 to vector<16x1xi32>
    %73 = arith.cmpi eq, %66, %72 : vector<16x1xi32>
    %74 = vector.shape_cast %73 : vector<16x1xi1> to vector<16x1xi1>
    %75 = vector.broadcast %74 : vector<16x1xi1> to vector<16x64xi1>
    %76 = arith.select %75, %48, %49 : vector<16x64xi1>, vector<16x64xf32>
    %77 = tpu.concatenate %71, %47, %76 in 1 : vector<16x64xf32>, vector<16x64xf32>, vector<16x64xf32> -> vector<16x192xf32>
    %78 = arith.truncf %77 : vector<16x192xf32> to vector<16x192xbf16>
    %c0_26 = arith.constant 0 : index
    %c0_27 = arith.constant 0 : index
    %79 = vector.load %arg4[%c0_26, %c0_27] : memref<192x128xbf16, #tpu.memory_space<vmem>>, vector<192x128xbf16>
    %cst_28 = arith.constant dense<0.000000e+00> : vector<16x128xf32>
    %80 = tpu.matmul %78, %79, %cst_28 {dimension_numbers = #tpu.dot_dimension_numbers<[1], [0], [0], [1], [0, 0, 1, 1], [], []>} : vector<16x192xbf16>, vector<192x128xbf16>, vector<16x128xf32> -> vector<16x128xf32>
    %c0_29 = arith.constant 0 : index
    %c0_30 = arith.constant 0 : index
    %81 = vector.load %arg5[%c0_29, %c0_30] : memref<1x128xf32, #tpu.memory_space<vmem>>, vector<1x128xf32>
    %82 = vector.broadcast %81 : vector<1x128xf32> to vector<16x128xf32>
    %83 = arith.addf %80, %82 : vector<16x128xf32>
    %84 = arith.truncf %1 : vector<16x64xf32> to vector<16x64xbf16>
    %c0_31 = arith.constant 0 : index
    %c0_32 = arith.constant 0 : index
    %85 = vector.load %arg6[%c0_31, %c0_32] : memref<64x128xbf16, #tpu.memory_space<vmem>>, vector<64x128xbf16>
    %cst_33 = arith.constant dense<0.000000e+00> : vector<16x128xf32>
    %86 = tpu.matmul %84, %85, %cst_33 {dimension_numbers = #tpu.dot_dimension_numbers<[1], [0], [0], [1], [0, 0, 1, 1], [], []>} : vector<16x64xbf16>, vector<64x128xbf16>, vector<16x128xf32> -> vector<16x128xf32>
    %87 = arith.addf %86, %83 : vector<16x128xf32>
    %88 = vector.shape_cast %87 : vector<16x128xf32> to vector<1x16x128xf32>
    %c0_34 = arith.constant 0 : index
    %c0_35 = arith.constant 0 : index
    %c0_36 = arith.constant 0 : index
    %89 = vector.load %arg7[%c0_34, %c0_35, %c0_36] : memref<1x16x128xf32, #tpu.memory_space<vmem>>, vector<1x16x128xf32>
    tpu.vector_store %arg7[%c0_34, %c0_35, %c0_36], %88 {strides = array<i32>} : memref<1x16x128xf32, #tpu.memory_space<vmem>>, vector<1x16x128xf32>,
    return
  }
  func.func @transform_0(%arg0: i32) -> (i32, i32, i32) {
    %c0_i32 = arith.constant 0 : i32
    %c0_i32_0 = arith.constant 0 : i32
    %c0_i32_1 = arith.constant 0 : i32
    return %arg0, %c0_i32, %c0_i32_0 : i32, i32, i32
  }
  func.func @transform_1(%arg0: i32) -> (i32, i32) {
    %c0_i32 = arith.constant 0 : i32
    %c0_i32_0 = arith.constant 0 : i32
    %c0_i32_1 = arith.constant 0 : i32
    return %c0_i32, %c0_i32_0 : i32, i32
  }
  func.func @transform_2(%arg0: i32) -> (i32, i32) {
    %c0_i32 = arith.constant 0 : i32
    %c0_i32_0 = arith.constant 0 : i32
    %c0_i32_1 = arith.constant 0 : i32
    return %c0_i32, %c0_i32_0 : i32, i32
  }
  func.func @transform_3(%arg0: i32) -> (i32, i32) {
    %c0_i32 = arith.constant 0 : i32
    %c0_i32_0 = arith.constant 0 : i32
    %c0_i32_1 = arith.constant 0 : i32
    return %c0_i32, %c0_i32_0 : i32, i32
  }
  func.func @transform_4(%arg0: i32) -> (i32, i32) {
    %c0_i32 = arith.constant 0 : i32
    %c0_i32_0 = arith.constant 0 : i32
    %c0_i32_1 = arith.constant 0 : i32
    return %c0_i32, %c0_i32_0 : i32, i32
  }
  func.func @transform_5(%arg0: i32) -> (i32, i32) {
    %c0_i32 = arith.constant 0 : i32
    %c0_i32_0 = arith.constant 0 : i32
    %c0_i32_1 = arith.constant 0 : i32
    return %c0_i32, %c0_i32_0 : i32, i32
  }
  func.func @transform_6(%arg0: i32) -> (i32, i32, i32) {
    %c0_i32 = arith.constant 0 : i32
    %c0_i32_0 = arith.constant 0 : i32
    %c0_i32_1 = arith.constant 0 : i32
    return %arg0, %c0_i32, %c0_i32_0 : i32, i32, i32
  }
}

</mosaic_0001>

<llo_original>
// kernel: tpu_custom_call.1
$region0: #{tpu_custom_call.1}
  #allocation0 [shape = 'u32[]', space=smem, size = 0x4, offset = 0x4, fixed_abs, tag = 'smem constant byte address 0x4 - core index']
  #allocation1 [shape = 'u32[144,128]{1,0:T(1,128)}', space=vmem, size = 0x12000, scoped, tag = 'internal scratch']
  %s0 = inlined_call_operand.hbm [shape: f32[2,16,64], index: 0, kind: input, shape index: {}]
  %s1 = inlined_call_operand.hbm [shape: bf16[192,64], index: 1, kind: input, shape index: {}]
  %s2 = inlined_call_operand.hbm [shape: f32[1,64], index: 2, kind: input, shape index: {}]
  %s3 = inlined_call_operand.hbm [shape: bf16[192,128], index: 3, kind: input, shape index: {}]
  %s4 = inlined_call_operand.hbm [shape: f32[1,128], index: 4, kind: input, shape index: {}]
  %s5 = inlined_call_operand.hbm [shape: bf16[64,128], index: 5, kind: input, shape index: {}]
  %s6 = inlined_call_operand.hbm [shape: f32[2,16,128], index: 6, kind: output, shape index: {}]
  %s7 = sld [smem:[#allocation0]]
  $region81: #{tpu_custom_call.1} parent=0
    _
  %s9 = ssub.s32 1, %s7
  %s10 = scalar_select 0, %s9, %s7
  $region1: #{tpu_custom_call.1} parent=0
    #allocation2 [shape = 'u8[16384]{0}', space=vmem, size = 0x4000, scoped, tag = 'input window, operand 0']
    #allocation3 [shape = 's32[2]{0}', space=sflag, size = 0x8, scoped, tag = 'scoped memory for tpu_custom_call.1']
    #allocation4 [shape = 's32[2]{0}', space=sflag, size = 0x8, scoped, tag = 'scoped memory for tpu_custom_call.1']
    #allocation5 [shape = 'u8[49152]{0}', space=vmem, size = 0xc000, scoped, tag = 'input window, operand 1, single buffered']
    #allocation6 [shape = 's32[1]{0}', space=sflag, size = 0x4, scoped, tag = 'scoped memory for tpu_custom_call.1']
    #allocation7 [shape = 'u8[512]{0}', space=vmem, size = 0x400, scoped, tag = 'input window, operand 2, single buffered']
    #allocation8 [shape = 'u8[49152]{0}', space=vmem, size = 0xc000, scoped, tag = 'input window, operand 3, single buffered']
    #allocation9 [shape = 's32[1]{0}', space=sflag, size = 0x4, scoped, tag = 'scoped memory for tpu_custom_call.1']
    #allocation10 [shape = 'u8[512]{0}', space=vmem, size = 0x400, scoped, tag = 'input window, operand 4, single buffered']
    #allocation11 [shape = 'u8[16384]{0}', space=vmem, size = 0x4000, scoped, tag = 'input window, operand 5, single buffered']
    #allocation12 [shape = 's32[1]{0}', space=sflag, size = 0x4, scoped, tag = 'scoped memory for tpu_custom_call.1']
    #allocation13 [shape = 'u8[16384]{0}', space=vmem, size = 0x4000, scoped, tag = 'output window, operand 0']
    %11 = vsyncpa [#allocation3], 0
    %s12 = scalar_lea.sflag [#allocation3], 1
    %13 = vsyncpa %s12, 0
    %14 = vsyncpa [#allocation6], 0
    %15 = vsyncpa [#allocation9], 0
    %16 = vsyncpa [#allocation12], 0
    %17 = vsyncpa [#allocation4], 0
    %s18 = scalar_lea.sflag [#allocation4], 1
    %19 = vsyncpa %s18, 0
    loop: start=0, step=1, limit=4
    $region2: #{tpu_custom_call.1} parent=1 // loop_pre_header
      _
    $region3: #{tpu_custom_call.1} parent=1 // loop_header
      %s21 = sphi 0, %s25
      %p22 = scmp.ge.s32.totalorder %s21, 4
      %s31 = sphi 0, %s33
      %s34 = sphi 0, %s31
      %s35 = sphi 0, %s34
      %s51 = sphi 0, %s35
      %s55 = sphi 0, %s55
      %s57 = sphi 0, %s55
      %s58 = sphi 0, %s57
      %s72 = sphi 0, %s58
      %s76 = sphi 0, %s76
      %s78 = sphi 0, %s76
      %s79 = sphi 0, %s78
      %s93 = sphi 0, %s79
      %s97 = sphi 0, %s97
      %s99 = sphi 0, %s97
      %s100 = sphi 0, %s99
      %s114 = sphi 0, %s100
      %s118 = sphi 0, %s118
      %s120 = sphi 0, %s118
      %s121 = sphi 0, %s120
      %s135 = sphi 0, %s121
      %s139 = sphi 0, %s139
      %s141 = sphi 0, %s139
      %s142 = sphi 0, %s141
      %s156 = sphi 0, %s142
      %s162 = sphi 0, %s164
      %s165 = sphi 0, %s162
      %s166 = sphi 0, %s165
      %s182 = sphi 0, %s166
    $region4: #{tpu_custom_call.1} parent=1 // loop_header_branch
      %24 = sbr.rel (%p22) target = $region8
    $region5: #{tpu_custom_call.1} parent=1 // loop_body
      %s26 = ssub.s32 %s21, 1
      %s27 = ssub.s32 %s21, 2
      %s28 = sadd.s32 %s21, 1
      %s29 = ssub.s32 %s21, %s28
      %p30 = scmp.eq.s32.totalorder %s29, 0
      %s32 = sadd.s32 %s31, 1
      %s33 = scalar_select %p30, %s31, %s32
      %p36 = pneg %p30
      %p37 = scmp.eq.s32.totalorder %s21, 1
      %p38 = por %p36, %p37
      %p39 = scmp.ne.s32.totalorder %s31, %s34
      %p40 = scmp.eq.s32.totalorder %s21, 0
      %p41 = por %p39, %p40
      %p42 = scmp.ne.s32.totalorder %s31, %s34
      %p43 = scmp.eq.s32.totalorder %s26, 1
      %p44 = por %p42, %p43
      %p45 = scmp.ne.s32.totalorder %s34, %s35
      %p46 = scmp.eq.s32.totalorder %s26, 0
      %p47 = por %p45, %p46
      %p48 = scmp.ne.s32.totalorder %s34, %s35
      %p49 = scmp.eq.s32.totalorder %s27, 1
      %p50 = por %p48, %p49
      %p52 = scmp.ne.s32.totalorder %s35, %s51
      %p53 = scmp.eq.s32.totalorder %s27, 0
      %p54 = por %p52, %p53
      %s56 = sadd.s32 %s55, 1
      %p59 = scmp.eq.s32.totalorder %s21, 1
      %p60 = scmp.ne.s32.totalorder %s55, %s57
      %p61 = scmp.eq.s32.totalorder %s21, 0
      %p62 = por %p60, %p61
      %p63 = scmp.ne.s32.totalorder %s55, %s57
      %p64 = scmp.eq.s32.totalorder %s26, 1
      %p65 = por %p63, %p64
      %p66 = scmp.ne.s32.totalorder %s57, %s58
      %p67 = scmp.eq.s32.totalorder %s26, 0
      %p68 = por %p66, %p67
      %p69 = scmp.ne.s32.totalorder %s57, %s58
      %p70 = scmp.eq.s32.totalorder %s27, 1
      %p71 = por %p69, %p70
      %p73 = scmp.ne.s32.totalorder %s58, %s72
      %p74 = scmp.eq.s32.totalorder %s27, 0
      %p75 = por %p73, %p74
      %s77 = sadd.s32 %s76, 1
      %p80 = scmp.eq.s32.totalorder %s21, 1
      %p81 = scmp.ne.s32.totalorder %s76, %s78
      %p82 = scmp.eq.s32.totalorder %s21, 0
      %p83 = por %p81, %p82
      %p84 = scmp.ne.s32.totalorder %s76, %s78
      %p85 = scmp.eq.s32.totalorder %s26, 1
      %p86 = por %p84, %p85
      %p87 = scmp.ne.s32.totalorder %s78, %s79
      %p88 = scmp.eq.s32.totalorder %s26, 0
      %p89 = por %p87, %p88
      %p90 = scmp.ne.s32.totalorder %s78, %s79
      %p91 = scmp.eq.s32.totalorder %s27, 1
      %p92 = por %p90, %p91
      %p94 = scmp.ne.s32.totalorder %s79, %s93
      %p95 = scmp.eq.s32.totalorder %s27, 0
      %p96 = por %p94, %p95
      %s98 = sadd.s32 %s97, 1
      %p101 = scmp.eq.s32.totalorder %s21, 1
      %p102 = scmp.ne.s32.totalorder %s97, %s99
      %p103 = scmp.eq.s32.totalorder %s21, 0
      %p104 = por %p102, %p103
      %p105 = scmp.ne.s32.totalorder %s97, %s99
      %p106 = scmp.eq.s32.totalorder %s26, 1
      %p107 = por %p105, %p106
      %p108 = scmp.ne.s32.totalorder %s99, %s100
      %p109 = scmp.eq.s32.totalorder %s26, 0
      %p110 = por %p108, %p109
      %p111 = scmp.ne.s32.totalorder %s99, %s100
      %p112 = scmp.eq.s32.totalorder %s27, 1
      %p113 = por %p111, %p112
      %p115 = scmp.ne.s32.totalorder %s100, %s114
      %p116 = scmp.eq.s32.totalorder %s27, 0
      %p117 = por %p115, %p116
      %s119 = sadd.s32 %s118, 1
      %p122 = scmp.eq.s32.totalorder %s21, 1
      %p123 = scmp.ne.s32.totalorder %s118, %s120
      %p124 = scmp.eq.s32.totalorder %s21, 0
      %p125 = por %p123, %p124
      %p126 = scmp.ne.s32.totalorder %s118, %s120
      %p127 = scmp.eq.s32.totalorder %s26, 1
      %p128 = por %p126, %p127
      %p129 = scmp.ne.s32.totalorder %s120, %s121
      %p130 = scmp.eq.s32.totalorder %s26, 0
      %p131 = por %p129, %p130
      %p132 = scmp.ne.s32.totalorder %s120, %s121
      %p133 = scmp.eq.s32.totalorder %s27, 1
      %p134 = por %p132, %p133
      %p136 = scmp.ne.s32.totalorder %s121, %s135
      %p137 = scmp.eq.s32.totalorder %s27, 0
      %p138 = por %p136, %p137
      %s140 = sadd.s32 %s139, 1
      %p143 = scmp.eq.s32.totalorder %s21, 1
      %p144 = scmp.ne.s32.totalorder %s139, %s141
      %p145 = scmp.eq.s32.totalorder %s21, 0
      %p146 = por %p144, %p145
      %p147 = scmp.ne.s32.totalorder %s139, %s141
      %p148 = scmp.eq.s32.totalorder %s26, 1
      %p149 = por %p147, %p148
      %p150 = scmp.ne.s32.totalorder %s141, %s142
      %p151 = scmp.eq.s32.totalorder %s26, 0
      %p152 = por %p150, %p151
      %p153 = scmp.ne.s32.totalorder %s141, %s142
      %p154 = scmp.eq.s32.totalorder %s27, 1
      %p155 = por %p153, %p154
      %p157 = scmp.ne.s32.totalorder %s142, %s156
      %p158 = scmp.eq.s32.totalorder %s27, 0
      %p159 = por %p157, %p158
      %s160 = ssub.s32 %s21, %s28
      %p161 = scmp.eq.s32.totalorder %s160, 0
      %s163 = sadd.s32 %s162, 1
      %s164 = scalar_select %p161, %s162, %s163
      %p167 = pneg %p161
      %p168 = scmp.eq.s32.totalorder %s21, 1
      %p169 = por %p167, %p168
      %p170 = scmp.ne.s32.totalorder %s162, %s165
      %p171 = scmp.eq.s32.totalorder %s21, 0
      %p172 = por %p170, %p171
      %p173 = scmp.ne.s32.totalorder %s162, %s165
      %p174 = scmp.eq.s32.totalorder %s26, 1
      %p175 = por %p173, %p174
      %p176 = scmp.ne.s32.totalorder %s165, %s166
      %p177 = scmp.eq.s32.totalorder %s26, 0
      %p178 = por %p176, %p177
      %p179 = scmp.ne.s32.totalorder %s165, %s166
      %p180 = scmp.eq.s32.totalorder %s27, 1
      %p181 = por %p179, %p180
      %p183 = scmp.ne.s32.totalorder %s166, %s182
      %p184 = scmp.eq.s32.totalorder %s27, 0
      %p185 = por %p183, %p184
      %p186 = scmp.le.s32.totalorder 1, %s21
      %p187 = scmp.lt.s32.totalorder %s21, 3
      %p188 = pnand %p186, %p187
      %p189 = pneg %p188
      // Predicated region
      $region9: #{tpu_custom_call.1} parent=5 // pred_check
        _
      $region10: #{tpu_custom_call.1} parent=5 // pred_check_branch
        %191 = sbr.rel (%p188) target = $region12
      $region11: #{tpu_custom_call.1} parent=5 // pred_region
        %s192 = ssub.s32 %s21, 1
        // Predicated region
        $region13: #{tpu_custom_call.1} parent=11 // pred_check
          %p193 = pneg %p68
        $region14: #{tpu_custom_call.1} parent=11 // pred_check_branch
          %195 = sbr.rel (%p193) target = $region16
        $region15: #{tpu_custom_call.1} parent=11 // pred_region
          %s197 = ssub.s32 1536, 1536
          %198 = vsyncadd [#allocation6], %s197
          %s199 = sshll.u32 [#allocation5], 4
          %s200 = int_to_ptr.vmem [resolvable:$true] %s199
          %205 = dma.hbm_to_vmem [thread:$0]  %s1, 1536, %s200, [#allocation6], 64, 64, 4
        $region16: #{tpu_custom_call.1} parent=11 // pred_fallthru
          _
        // Predicated region
        $region17: #{tpu_custom_call.1} parent=11 // pred_check
          %p206 = pneg %p89
        $region18: #{tpu_custom_call.1} parent=11 // pred_check_branch
          %208 = sbr.rel (%p206) target = $region20
        $region19: #{tpu_custom_call.1} parent=11 // pred_region
          %s210 = ssub.s32 16, 16
          %211 = vsyncadd [#allocation6], %s210
          %s213 = sshll.u32 [#allocation7], 4
          %s214 = int_to_ptr.vmem [resolvable:$true] %s213
          %216 = dma.hbm_to_vmem [thread:$0]  %s2, 16, %s214, [#allocation6]
        $region20: #{tpu_custom_call.1} parent=11 // pred_fallthru
          _
        // Predicated region
        $region21: #{tpu_custom_call.1} parent=11 // pred_check
          %p217 = pneg %p110
        $region22: #{tpu_custom_call.1} parent=11 // pred_check_branch
          %219 = sbr.rel (%p217) target = $region24
        $region23: #{tpu_custom_call.1} parent=11 // pred_region
          %s221 = ssub.s32 1536, 1536
          %222 = vsyncadd [#allocation9], %s221
          %s223 = sshll.u32 [#allocation8], 4
          %s224 = int_to_ptr.vmem [resolvable:$true] %s223
          %229 = dma.hbm_to_vmem [thread:$0]  %s3, 1536, %s224, [#allocation9], 64, 64, 4
        $region24: #{tpu_custom_call.1} parent=11 // pred_fallthru
          _
        // Predicated region
        $region25: #{tpu_custom_call.1} parent=11 // pred_check
          %p230 = pneg %p131
        $region26: #{tpu_custom_call.1} parent=11 // pred_check_branch
          %232 = sbr.rel (%p230) target = $region28
        $region27: #{tpu_custom_call.1} parent=11 // pred_region
          %s234 = ssub.s32 16, 16
          %235 = vsyncadd [#allocation9], %s234
          %s237 = sshll.u32 [#allocation10], 4
          %s238 = int_to_ptr.vmem [resolvable:$true] %s237
          %240 = dma.hbm_to_vmem [thread:$0]  %s4, 16, %s238, [#allocation9]
        $region28: #{tpu_custom_call.1} parent=11 // pred_fallthru
          _
        // Predicated region
        $region29: #{tpu_custom_call.1} parent=11 // pred_check
          %p241 = pneg %p152
        $region30: #{tpu_custom_call.1} parent=11 // pred_check_branch
          %243 = sbr.rel (%p241) target = $region32
        $region31: #{tpu_custom_call.1} parent=11 // pred_region
          %s245 = ssub.s32 512, 512
          %246 = vsyncadd [#allocation12], %s245
          %s247 = sshll.u32 [#allocation11], 4
          %s248 = int_to_ptr.vmem [resolvable:$true] %s247
          %253 = dma.hbm_to_vmem [thread:$0]  %s5, 512, %s248, [#allocation12], 64, 64, 4
        $region32: #{tpu_custom_call.1} parent=11 // pred_fallthru
          _
      $region12: #{tpu_custom_call.1} parent=5 // pred_fallthru
        _
      %p254 = scmp.lt.s32.totalorder %s21, 2
      // Predicated region
      $region33: #{tpu_custom_call.1} parent=5 // pred_check
        %p255 = pneg %p254
      $region34: #{tpu_custom_call.1} parent=5 // pred_check_branch
        %257 = sbr.rel (%p255) target = $region36
      $region35: #{tpu_custom_call.1} parent=5 // pred_region
        // Predicated region
        $region37: #{tpu_custom_call.1} parent=35 // pred_check
          %p258 = pneg %p41
        $region38: #{tpu_custom_call.1} parent=35 // pred_check_branch
          %260 = sbr.rel (%p258) target = $region40
        $region39: #{tpu_custom_call.1} parent=35 // pred_region
          %s261 = sand.u32 %s31, 1
          %s262 = scalar_lea.sflag [#allocation3], %s261
          %s263 = sand.u32 %s31, 1
          %s264 = smul.addr %s263, 16
          %s265 = scalar_lea.vmem [#allocation2], %s264
          %s267 = ssub.s32 256, 256
          %268 = vsyncadd %s262, %s267
          %s269 = smul.addr %s21, 2
          %s270 = smul.addr %s269, 128
          %s271 = scalar_lea.hbm %s0, %s270
          %s272 = sshll.u32 %s265, 4
          %s273 = int_to_ptr.vmem [resolvable:$true] %s272
          %278 = dma.hbm_to_vmem [thread:$0]  %s271, 256, %s273, %s262, 128, 128, 8
        $region40: #{tpu_custom_call.1} parent=35 // pred_fallthru
          _
      $region36: #{tpu_custom_call.1} parent=5 // pred_fallthru
        _
      %p279 = scmp.le.s32.totalorder 1, %s21
      %p280 = scmp.lt.s32.totalorder %s21, 3
      %p281 = pnand %p279, %p280
      %p282 = pneg %p281
      // Predicated region
      $region41: #{tpu_custom_call.1} parent=5 // pred_check
        _
      $region42: #{tpu_custom_call.1} parent=5 // pred_check_branch
        %284 = sbr.rel (%p281) target = $region44
      $region43: #{tpu_custom_call.1} parent=5 // pred_region
        %s285 = ssub.s32 %s21, 1
        %s286 = sand.u32 %s34, 1
        %s287 = scalar_lea.sflag [#allocation3], %s286
        %s288 = sand.u32 %s34, 1
        %s289 = smul.addr %s288, 16
        %s290 = scalar_lea.vmem [#allocation2], %s289
        // Predicated region
        $region45: #{tpu_custom_call.1} parent=43 // pred_check
          %p291 = pneg %p47
        $region46: #{tpu_custom_call.1} parent=43 // pred_check_branch
          %293 = sbr.rel (%p291) target = $region48
        $region47: #{tpu_custom_call.1} parent=43 // pred_region
          %294 = dma.done %s287, 256
        $region48: #{tpu_custom_call.1} parent=43 // pred_fallthru
          _
        // Predicated region
        $region49: #{tpu_custom_call.1} parent=43 // pred_check
          %p295 = pneg %p68
        $region50: #{tpu_custom_call.1} parent=43 // pred_check_branch
          %297 = sbr.rel (%p295) target = $region52
        $region51: #{tpu_custom_call.1} parent=43 // pred_region
          %298 = dma.done [#allocation6], 1536
        $region52: #{tpu_custom_call.1} parent=43 // pred_fallthru
          _
        // Predicated region
        $region53: #{tpu_custom_call.1} parent=43 // pred_check
          %p299 = pneg %p89
        $region54: #{tpu_custom_call.1} parent=43 // pred_check_branch
          %301 = sbr.rel (%p299) target = $region56
        $region55: #{tpu_custom_call.1} parent=43 // pred_region
          %302 = dma.done [#allocation6], 16
        $region56: #{tpu_custom_call.1} parent=43 // pred_fallthru
          _
        // Predicated region
        $region57: #{tpu_custom_call.1} parent=43 // pred_check
          %p303 = pneg %p110
        $region58: #{tpu_custom_call.1} parent=43 // pred_check_branch
          %305 = sbr.rel (%p303) target = $region60
        $region59: #{tpu_custom_call.1} parent=43 // pred_region
          %306 = dma.done [#allocation9], 1536
        $region60: #{tpu_custom_call.1} parent=43 // pred_fallthru
          _
        // Predicated region
        $region61: #{tpu_custom_call.1} parent=43 // pred_check
          %p307 = pneg %p131
        $region62: #{tpu_custom_call.1} parent=43 // pred_check_branch
          %309 = sbr.rel (%p307) target = $region64
        $region63: #{tpu_custom_call.1} parent=43 // pred_region
          %310 = dma.done [#allocation9], 16
        $region64: #{tpu_custom_call.1} parent=43 // pred_fallthru
          _
        // Predicated region
        $region65: #{tpu_custom_call.1} parent=43 // pred_check
          %p311 = pneg %p152
        $region66: #{tpu_custom_call.1} parent=43 // pred_check_branch
          %313 = sbr.rel (%p311) target = $region68
        $region67: #{tpu_custom_call.1} parent=43 // pred_region
          %314 = dma.done [#allocation12], 512
        $region68: #{tpu_custom_call.1} parent=43 // pred_fallthru
          _
        %s315 = sand.u32 %s34, 1
        %s316 = scalar_lea.sflag [#allocation3], %s315
        %s317 = sand.u32 %s34, 1
        %s318 = smul.addr %s317, 16
        %s319 = scalar_lea.vmem [#allocation2], %s318
        %p320 = pneg %p47
        %p321 = pneg %p44
        %p322 = pneg %p68
        %p323 = pneg %p65
        %p324 = pneg %p89
        %p325 = pneg %p86
        %p326 = pneg %p110
        %p327 = pneg %p107
        %p328 = pneg %p131
        %p329 = pneg %p128
        %p330 = pneg %p152
        %p331 = pneg %p149
        %p332 = pneg %p178
        %p333 = pneg %p175
        %s334 = sand.u32 %s165, 1
        %s335 = scalar_lea.sflag [#allocation4], %s334
        %s336 = sand.u32 %s165, 1
        %s337 = smul.addr %s336, 16
        %s338 = scalar_lea.vmem [#allocation13], %s337
        %v340 = vld [vmem:[%s290] sm:$0xff]
        %v341 = vld [vmem:[%s290 + $0x8] sm:$0xff]
        %vm342 = vcmp.gt.f32.partialorder %v340, 0.0
        %vm343 = vcmp.gt.f32.partialorder %v341, 0.0
        %v344 = vmul.f32 %v340, 0.2
        %v345 = vmul.f32 %v341, 0.2
        %v346 = vsel %vm342, %v340, %v344
        %v347 = vsel %vm343, %v341, %v345
        %v348 = vrot.slane %v346, 7
        %v349 = vrot.slane %v347, 7
        %v350 = vlaneseq
        %v351 = vshrl.u32 %v350, 7
        %vm352 = vcmp.lt.s32.totalorder %v351, 1
        %v353 = vsel %vm352, %v348, %v349
        %v354 = vsel %vm352, %v349, %v348
        %v355 = vrot.slane %v346, 1
        %v356 = vrot.slane %v347, 1
        %vm357 = vcmp.lt.s32.totalorder %v351, 7
        %v358 = vsel %vm357, %v355, %v356
        %v359 = vsel %vm357, %v356, %v355
        %v360 = vadd.s32 %v351, 8
        %vm361 = vcmp.lt.s32.totalorder %v351, 0
        %v362 = vsub.s32 0, %v351
        %v363 = vsel %vm361, %v362, %v351
        %v364 = vshrl.u32 %v363, 4
        %v365 = vand.u32 %v363, 15
        %v366 = vsub.s32 0, %v365
        %v367 = vsel %vm361, %v366, %v365
        %vm368 = vcmp.lt.s32.totalorder %v360, 0
        %v369 = vsub.s32 0, %v360
        %v370 = vsel %vm368, %v369, %v360
        %v371 = vshrl.u32 %v370, 4
        %v372 = vand.u32 %v370, 15
        %v373 = vsub.s32 0, %v372
        %v374 = vsel %vm368, %v373, %v372
        %vm375 = vcmp.ne.s32.totalorder %v367, 0
        %vm376 = vcmp.ne.s32.totalorder %v374, 0
        %vm377 = vcmp.lt.s32.totalorder %v367, 0
        %vm378 = vcmp.lt.s32.totalorder %v374, 0
        %vm379 = vmand %vm377, %vm375
        %vm380 = vmand %vm378, %vm376
        %v381 = vadd.s32 %v367, 16
        %v382 = vadd.s32 %v374, 16
        %v383 = vsel %vm379, %v381, %v367
        %v384 = vsel %vm380, %v382, %v374
        %vm385 = vcmp.eq.s32.totalorder %v383, 0
        %vm386 = vcmp.eq.s32.totalorder %v384, 0
        %v387 = vsel %vm385, 1, 0
        %v388 = vsel %vm386, 1, 0
        %vm389 = vcmp.eq.s32.totalorder %v387, 1
        %vm390 = vcmp.eq.s32.totalorder %v388, 1
        %v391 = vsel %vm389, %v358, %v354
        %v392 = vsel %vm390, %v359, %v353
        %vm393 = vcmp.eq.s32.totalorder %v383, 15
        %vm394 = vcmp.eq.s32.totalorder %v384, 15
        %v395 = vsel %vm393, 1, 0
        %v396 = vsel %vm394, 1, 0
        %vm397 = vcmp.eq.s32.totalorder %v395, 1
        %vm398 = vcmp.eq.s32.totalorder %v396, 1
        %v399 = vsel %vm397, %v354, %v358
        %v400 = vsel %vm398, %v353, %v359
        %403 = vrot.lane.b32.xlu0 %v346, 64
        %v404 = vpop.permute.xlu0 %403
        %405 = vrot.lane.b32.xlu0 %v347, 64
        %v406 = vpop.permute.xlu0 %405
        %vm409 = vcmask 523264
        %v410 = vsel %vm409, %v391, %v404
        %v411 = vsel %vm409, %v392, %v406
        %v412 = vpack.c.bf16 %v411, %v410
        %v413 = vpack.c.bf16 %v400, %v399
        %v414 = vld [vmem:[#allocation5] sm:$0xf]
        %v415 = vld [vmem:[#allocation5 + $0x4] sm:$0xf]
        %v416 = vld [vmem:[#allocation5 + $0x8] sm:$0xf]
        %v417 = vld [vmem:[#allocation5 + $0xc] sm:$0xf]
        %v418 = vld [vmem:[#allocation5 + $0x10] sm:$0xf]
        %v419 = vld [vmem:[#allocation5 + $0x14] sm:$0xf]
        %v420 = vld [vmem:[#allocation5 + $0x18] sm:$0xf]
        %v421 = vld [vmem:[#allocation5 + $0x1c] sm:$0xf]
        %v422 = vld [vmem:[#allocation5 + $0x20] sm:$0xf]
        %v423 = vld [vmem:[#allocation5 + $0x24] sm:$0xf]
        %v424 = vld [vmem:[#allocation5 + $0x28] sm:$0xf]
        %v425 = vld [vmem:[#allocation5 + $0x2c] sm:$0xf]
        %v426 = vld [vmem:[#allocation5 + $0x30] sm:$0xf]
        %v427 = vld [vmem:[#allocation5 + $0x34] sm:$0xf]
        %v428 = vld [vmem:[#allocation5 + $0x38] sm:$0xf]
        %v429 = vld [vmem:[#allocation5 + $0x3c] sm:$0xf]
        %v430 = vld [vmem:[#allocation5 + $0x40] sm:$0xf]
        %v431 = vld [vmem:[#allocation5 + $0x44] sm:$0xf]
        %v432 = vld [vmem:[#allocation5 + $0x48] sm:$0xf]
        %v433 = vld [vmem:[#allocation5 + $0x4c] sm:$0xf]
        %v434 = vld [vmem:[#allocation5 + $0x50] sm:$0xf]
        %v435 = vld [vmem:[#allocation5 + $0x54] sm:$0xf]
        %v436 = vld [vmem:[#allocation5 + $0x58] sm:$0xf]
        %v437 = vld [vmem:[#allocation5 + $0x5c] sm:$0xf]
        %v438 = vld [vmem:[#allocation7] sm:$0x1]
        %v440 = vlaneseq
        %v441 = vshrl.u32 %v440, 7
        %v442 = vsub.s32 0, %v441
        %v443 = vrot.slane %v438, %v442
        %v469 = vunpack.c.l.b16 %v414
        %v470 = vunpack.c.l.b16 %v415
        %v471 = vunpack.c.l.b16 %v416
        %v472 = vunpack.c.l.b16 %v417
        %v473 = vunpack.c.l.b16 %v418
        %v474 = vunpack.c.l.b16 %v419
        %v475 = vunpack.c.l.b16 %v420
        %v476 = vunpack.c.l.b16 %v421
        %v477 = vunpack.c.l.b16 %v422
        %v478 = vunpack.c.l.b16 %v423
        %v479 = vunpack.c.l.b16 %v424
        %v480 = vunpack.c.l.b16 %v425
        %v481 = vunpack.c.l.b16 %v426
        %v482 = vunpack.c.l.b16 %v427
        %v483 = vunpack.c.l.b16 %v428
        %v484 = vunpack.c.l.b16 %v429
        %v485 = vunpack.c.l.b16 %v430
        %v486 = vunpack.c.l.b16 %v431
        %v487 = vunpack.c.l.b16 %v432
        %v488 = vunpack.c.l.b16 %v433
        %v489 = vunpack.c.l.b16 %v434
        %v490 = vunpack.c.l.b16 %v435
        %v491 = vunpack.c.l.b16 %v436
        %v492 = vunpack.c.l.b16 %v437
        %v493 = vpack.c.b16 %v470, %v469
        %v494 = vpack.c.b16 %v472, %v471
        %v495 = vpack.c.b16 %v474, %v473
        %v496 = vpack.c.b16 %v476, %v475
        %v497 = vpack.c.b16 %v478, %v477
        %v498 = vpack.c.b16 %v480, %v479
        %v499 = vpack.c.b16 %v482, %v481
        %v500 = vpack.c.b16 %v484, %v483
        %v501 = vpack.c.b16 %v486, %v485
        %v502 = vpack.c.b16 %v488, %v487
        %v503 = vpack.c.b16 %v490, %v489
        %v504 = vpack.c.b16 %v492, %v491
        %v518 = vsel %vm409, %v413, 0
        %520 = vmatprep.subr.bf16.mxu0 0
        %521 = vmatpush1.bf16.msra.mxu0 %v493
        %522 = vmatprep.subr.bf16.mxu0 0
        %523 = vmatpush1.bf16.msra.mxu0 %v494
        %524 = vmatprep.subr.bf16.mxu0 0
        %525 = vmatpush1.bf16.msra.mxu0 %v495
        %526 = vmatprep.subr.bf16.mxu0 0
        %527 = vmatpush1.bf16.msra.mxu0 %v496
        %528 = vmatprep.subr.bf16.mxu0 0
        %529 = vmatpush1.bf16.msra.mxu0 %v497
        %530 = vmatprep.subr.bf16.mxu0 0
        %531 = vmatpush1.bf16.msra.mxu0 %v498
        %532 = vmatprep.subr.bf16.mxu0 0
        %533 = vmatpush1.bf16.msra.mxu0 %v499
        %534 = vmatprep.subr.bf16.mxu0 0
        %535 = vmatpush1.bf16.msra.mxu0 %v500
        %536 = vmatprep.subr.bf16.mxu0 0
        %537 = vmatpush1.bf16.msra.mxu0 %v501
        %538 = vmatprep.subr.bf16.mxu0 0
        %539 = vmatpush1.bf16.msra.mxu0 %v502
        %540 = vmatprep.subr.bf16.mxu0 0
        %541 = vmatpush1.bf16.msra.mxu0 %v503
        %542 = vmatprep.subr.bf16.mxu0 0
        %543 = vmatpush1.bf16.msra.mxu0 %v504
        %544 = vmatprep.subr.bf16.mxu0 0
        %545 = vmatpush1.bf16.msra.mxu0 0
        %546 = vmatprep.subr.bf16.mxu0 0
        %547 = vmatpush1.bf16.msra.mxu0 0
        %548 = vmatprep.subr.bf16.mxu0 0
        %549 = vmatpush1.bf16.msra.mxu0 0
        %550 = vmatprep.subr.bf16.mxu0 0
        %551 = vmatpush1.bf16.msra.mxu0 0
        %552 = vmatprep.mubr.bf16.mxu0 %v518
        %553 = vmatmul.mubr.bf16.gmra.mrb[0].mxu0 %v412
        %v554 = vpop.f32.mrb[0].mxu0
        %v555 = vadd.f32 %v443, %v554
        %v556 = vpop.f32.mrb[0].mxu0
        %v557 = vpop.f32.mrb[0].mxu0
        %v558 = vadd.f32 %v443, %v557
        %v559 = vpop.f32.mrb[0].mxu0
        %560 = vdwg.mxu0
        %vm561 = vcmp.gt.f32.partialorder %v555, 0.0
        %vm562 = vcmp.gt.f32.partialorder %v558, 0.0
        %v563 = vmul.f32 %v555, 0.2
        %v564 = vmul.f32 %v558, 0.2
        %v565 = vsel %vm561, %v555, %v563
        %v566 = vsel %vm562, %v558, %v564
        %v567 = vrot.slane %v565, 7
        %v568 = vrot.slane %v566, 7
        %v569 = vsel %vm352, %v567, %v568
        %v570 = vsel %vm352, %v568, %v567
        %v571 = vrot.slane %v565, 1
        %v572 = vrot.slane %v566, 1
        %v573 = vsel %vm357, %v571, %v572
        %v574 = vsel %vm357, %v572, %v571
        %v575 = vsel %vm389, %v573, %v570
        %v576 = vsel %vm390, %v574, %v569
        %v577 = vsel %vm397, %v570, %v573
        %v578 = vsel %vm398, %v569, %v574
        %581 = vrot.lane.b32.xlu0 %v565, 64
        %v582 = vpop.permute.xlu0 %581
        %583 = vrot.lane.b32.xlu0 %v566, 64
        %v584 = vpop.permute.xlu0 %583
        %v587 = vsel %vm409, %v575, %v582
        %v588 = vsel %vm409, %v576, %v584
        %v589 = vpack.c.bf16 %v588, %v587
        %v590 = vpack.c.bf16 %v578, %v577
        %v591 = vld [vmem:[#allocation8] sm:$0xf]
        %v592 = vld [vmem:[#allocation8 + $0x4] sm:$0xf]
        %v593 = vld [vmem:[#allocation8 + $0x8] sm:$0xf]
        %v594 = vld [vmem:[#allocation8 + $0xc] sm:$0xf]
        %v595 = vld [vmem:[#allocation8 + $0x10] sm:$0xf]
        %v596 = vld [vmem:[#allocation8 + $0x14] sm:$0xf]
        %v597 = vld [vmem:[#allocation8 + $0x18] sm:$0xf]
        %v598 = vld [vmem:[#allocation8 + $0x1c] sm:$0xf]
        %v599 = vld [vmem:[#allocation8 + $0x20] sm:$0xf]
        %v600 = vld [vmem:[#allocation8 + $0x24] sm:$0xf]
        %v601 = vld [vmem:[#allocation8 + $0x28] sm:$0xf]
        %v602 = vld [vmem:[#allocation8 + $0x2c] sm:$0xf]
        %v603 = vld [vmem:[#allocation8 + $0x30] sm:$0xf]
        %v604 = vld [vmem:[#allocation8 + $0x34] sm:$0xf]
        %v605 = vld [vmem:[#allocation8 + $0x38] sm:$0xf]
        %v606 = vld [vmem:[#allocation8 + $0x3c] sm:$0xf]
        %v607 = vld [vmem:[#allocation8 + $0x40] sm:$0xf]
        %v608 = vld [vmem:[#allocation8 + $0x44] sm:$0xf]
        %v609 = vld [vmem:[#allocation8 + $0x48] sm:$0xf]
        %v610 = vld [vmem:[#allocation8 + $0x4c] sm:$0xf]
        %v611 = vld [vmem:[#allocation8 + $0x50] sm:$0xf]
        %v612 = vld [vmem:[#allocation8 + $0x54] sm:$0xf]
        %v613 = vld [vmem:[#allocation8 + $0x58] sm:$0xf]
        %v614 = vld [vmem:[#allocation8 + $0x5c] sm:$0xf]
        %v615 = vld [vmem:[#allocation10] sm:$0x1]
        %v617 = vlaneseq
        %v618 = vshrl.u32 %v617, 7
        %v619 = vsub.s32 0, %v618
        %v620 = vrot.slane %v615, %v619
        %v646 = vunpack.c.l.b16 %v591
        %v647 = vunpack.c.l.b16 %v592
        %v648 = vunpack.c.l.b16 %v593
        %v649 = vunpack.c.l.b16 %v594
        %v650 = vunpack.c.l.b16 %v595
        %v651 = vunpack.c.l.b16 %v596
        %v652 = vunpack.c.l.b16 %v597
        %v653 = vunpack.c.l.b16 %v598
        %v654 = vunpack.c.l.b16 %v599
        %v655 = vunpack.c.l.b16 %v600
        %v656 = vunpack.c.l.b16 %v601
        %v657 = vunpack.c.l.b16 %v602
        %v658 = vunpack.c.l.b16 %v603
        %v659 = vunpack.c.l.b16 %v604
        %v660 = vunpack.c.l.b16 %v605
        %v661 = vunpack.c.l.b16 %v606
        %v662 = vunpack.c.l.b16 %v607
        %v663 = vunpack.c.l.b16 %v608
        %v664 = vunpack.c.l.b16 %v609
        %v665 = vunpack.c.l.b16 %v610
        %v666 = vunpack.c.l.b16 %v611
        %v667 = vunpack.c.l.b16 %v612
        %v668 = vunpack.c.l.b16 %v613
        %v669 = vunpack.c.l.b16 %v614
        %v670 = vpack.c.b16 %v647, %v646
        %v671 = vpack.c.b16 %v649, %v648
        %v672 = vpack.c.b16 %v651, %v650
        %v673 = vpack.c.b16 %v653, %v652
        %v674 = vpack.c.b16 %v655, %v654
        %v675 = vpack.c.b16 %v657, %v656
        %v676 = vpack.c.b16 %v659, %v658
        %v677 = vpack.c.b16 %v661, %v660
        %v678 = vpack.c.b16 %v663, %v662
        %v679 = vpack.c.b16 %v665, %v664
        %v680 = vpack.c.b16 %v667, %v666
        %v681 = vpack.c.b16 %v669, %v668
        %v695 = vsel %vm409, %v590, 0
        %697 = vmatprep.subr.bf16.mxu0 0
        %698 = vmatpush1.bf16.msra.mxu0 %v670
        %699 = vmatprep.subr.bf16.mxu0 0
        %700 = vmatpush1.bf16.msra.mxu0 %v671
        %701 = vmatprep.subr.bf16.mxu0 0
        %702 = vmatpush1.bf16.msra.mxu0 %v672
        %703 = vmatprep.subr.bf16.mxu0 0
        %704 = vmatpush1.bf16.msra.mxu0 %v673
        %705 = vmatprep.subr.bf16.mxu0 0
        %706 = vmatpush1.bf16.msra.mxu0 %v674
        %707 = vmatprep.subr.bf16.mxu0 0
        %708 = vmatpush1.bf16.msra.mxu0 %v675
        %709 = vmatprep.subr.bf16.mxu0 0
        %710 = vmatpush1.bf16.msra.mxu0 %v676
        %711 = vmatprep.subr.bf16.mxu0 0
        %712 = vmatpush1.bf16.msra.mxu0 %v677
        %713 = vmatprep.subr.bf16.mxu0 0
        %714 = vmatpush1.bf16.msra.mxu0 %v678
        %715 = vmatprep.subr.bf16.mxu0 0
        %716 = vmatpush1.bf16.msra.mxu0 %v679
        %717 = vmatprep.subr.bf16.mxu0 0
        %718 = vmatpush1.bf16.msra.mxu0 %v680
        %719 = vmatprep.subr.bf16.mxu0 0
        %720 = vmatpush1.bf16.msra.mxu0 %v681
        %721 = vmatprep.subr.bf16.mxu0 0
        %722 = vmatpush1.bf16.msra.mxu0 0
        %723 = vmatprep.subr.bf16.mxu0 0
        %724 = vmatpush1.bf16.msra.mxu0 0
        %725 = vmatprep.subr.bf16.mxu0 0
        %726 = vmatpush1.bf16.msra.mxu0 0
        %727 = vmatprep.subr.bf16.mxu0 0
        %728 = vmatpush1.bf16.msra.mxu0 0
        %729 = vmatprep.mubr.bf16.mxu0 %v695
        %730 = vmatmul.mubr.bf16.gmra.mrb[0].mxu0 %v589
        %v731 = vpop.f32.mrb[0].mxu0
        %v732 = vadd.f32 %v620, %v731
        %v733 = vpop.f32.mrb[0].mxu0
        %v734 = vpop.f32.mrb[0].mxu0
        %v735 = vadd.f32 %v620, %v734
        %v736 = vpop.f32.mrb[0].mxu0
        %737 = vdwg.mxu0
        %v738 = vpack.c.bf16 %v341, %v340
        %v739 = vld [vmem:[#allocation11] sm:$0xf]
        %v740 = vld [vmem:[#allocation11 + $0x4] sm:$0xf]
        %v741 = vld [vmem:[#allocation11 + $0x8] sm:$0xf]
        %v742 = vld [vmem:[#allocation11 + $0xc] sm:$0xf]
        %v743 = vld [vmem:[#allocation11 + $0x10] sm:$0xf]
        %v744 = vld [vmem:[#allocation11 + $0x14] sm:$0xf]
        %v745 = vld [vmem:[#allocation11 + $0x18] sm:$0xf]
        %v746 = vld [vmem:[#allocation11 + $0x1c] sm:$0xf]
        %v755 = vunpack.c.l.b16 %v739
        %v756 = vunpack.c.l.b16 %v740
        %v757 = vunpack.c.l.b16 %v741
        %v758 = vunpack.c.l.b16 %v742
        %v759 = vunpack.c.l.b16 %v743
        %v760 = vunpack.c.l.b16 %v744
        %v761 = vunpack.c.l.b16 %v745
        %v762 = vunpack.c.l.b16 %v746
        %v763 = vpack.c.b16 %v756, %v755
        %v764 = vpack.c.b16 %v758, %v757
        %v765 = vpack.c.b16 %v760, %v759
        %v766 = vpack.c.b16 %v762, %v761
        %v772 = vsel %vm409, %v738, 0
        %774 = vmatprep.subr.bf16.mxu0 0
        %775 = vmatpush1.bf16.msra.mxu0 %v763
        %776 = vmatprep.subr.bf16.mxu0 0
        %777 = vmatpush1.bf16.msra.mxu0 %v764
        %778 = vmatprep.subr.bf16.mxu0 0
        %779 = vmatpush1.bf16.msra.mxu0 %v765
        %780 = vmatprep.subr.bf16.mxu0 0
        %781 = vmatpush1.bf16.msra.mxu0 %v766
        %782 = vmatprep.subr.bf16.mxu0 0
        %783 = vmatpush1.bf16.msra.mxu0 0
        %784 = vmatprep.subr.bf16.mxu0 0
        %785 = vmatpush1.bf16.msra.mxu0 0
        %786 = vmatprep.subr.bf16.mxu0 0
        %787 = vmatpush1.bf16.msra.mxu0 0
        %788 = vmatprep.subr.bf16.mxu0 0
        %789 = vmatpush1.bf16.msra.mxu0 0
        %790 = vmatprep.subr.bf16.mxu0 0
        %791 = vmatpush1.bf16.msra.mxu0 0
        %792 = vmatprep.subr.bf16.mxu0 0
        %793 = vmatpush1.bf16.msra.mxu0 0
        %794 = vmatprep.subr.bf16.mxu0 0
        %795 = vmatpush1.bf16.msra.mxu0 0
        %796 = vmatprep.subr.bf16.mxu0 0
        %797 = vmatpush1.bf16.msra.mxu0 0
        %798 = vmatprep.subr.bf16.mxu0 0
        %799 = vmatpush1.bf16.msra.mxu0 0
        %800 = vmatprep.subr.bf16.mxu0 0
        %801 = vmatpush1.bf16.msra.mxu0 0
        %802 = vmatprep.subr.bf16.mxu0 0
        %803 = vmatpush1.bf16.msra.mxu0 0
        %804 = vmatprep.subr.bf16.mxu0 0
        %805 = vmatpush1.bf16.msra.mxu0 0
        %806 = vmatprep.mubr.bf16.mxu0 0
        %807 = vmatmul.mubr.bf16.gmra.mrb[0].mxu0 %v772
        %v808 = vpop.f32.mrb[0].mxu0
        %v809 = vadd.f32 %v732, %v808
        %v810 = vpop.f32.mrb[0].mxu0
        %v811 = vpop.f32.mrb[0].mxu0
        %v812 = vadd.f32 %v735, %v811
        %v813 = vpop.f32.mrb[0].mxu0
        %814 = vdwg.mxu0
        %815 = vst [vmem:[%s338] sm:$0xff] %v809
        %816 = vst [vmem:[%s338 + $0x8] sm:$0xff] %v812
        %s817 = sand.u32 %s165, 1
        %s818 = scalar_lea.sflag [#allocation4], %s817
        %s819 = sand.u32 %s165, 1
        %s820 = smul.addr %s819, 16
        %s821 = scalar_lea.vmem [#allocation13], %s820
        // Predicated region
        $region69: #{tpu_custom_call.1} parent=43 // pred_check
          %p822 = pneg %p175
        $region70: #{tpu_custom_call.1} parent=43 // pred_check_branch
          %824 = sbr.rel (%p822) target = $region72
        $region71: #{tpu_custom_call.1} parent=43 // pred_region
          %s826 = ssub.s32 256, 256
          %827 = vsyncadd %s818, %s826
          %s828 = smul.addr %s26, 2
          %s829 = smul.addr %s828, 128
          %s830 = scalar_lea.hbm %s6, %s829
          %s831 = sshll.u32 %s821, 4
          %s832 = int_to_ptr.vmem [resolvable:$true] %s831
          %837 = dma.vmem_to_hbm [thread:$0]  %s832, 256, %s830, %s818, 128, 128, 8
        $region72: #{tpu_custom_call.1} parent=43 // pred_fallthru
          _
      $region44: #{tpu_custom_call.1} parent=5 // pred_fallthru
        _
      %p838 = scmp.le.s32.totalorder 2, %s21
      // Predicated region
      $region73: #{tpu_custom_call.1} parent=5 // pred_check
        %p839 = pneg %p838
      $region74: #{tpu_custom_call.1} parent=5 // pred_check_branch
        %841 = sbr.rel (%p839) target = $region76
      $region75: #{tpu_custom_call.1} parent=5 // pred_region
        %s842 = ssub.s32 %s21, 2
        // Predicated region
        $region77: #{tpu_custom_call.1} parent=75 // pred_check
          %p843 = pneg %p181
        $region78: #{tpu_custom_call.1} parent=75 // pred_check_branch
          %845 = sbr.rel (%p843) target = $region80
        $region79: #{tpu_custom_call.1} parent=75 // pred_region
          %s846 = sand.u32 %s166, 1
          %s847 = scalar_lea.sflag [#allocation4], %s846
          %s848 = sand.u32 %s166, 1
          %s849 = smul.addr %s848, 16
          %s850 = scalar_lea.vmem [#allocation13], %s849
          %851 = dma.done %s847, 256
        $region80: #{tpu_custom_call.1} parent=75 // pred_fallthru
          _
      $region76: #{tpu_custom_call.1} parent=5 // pred_fallthru
        _
    $region6: #{tpu_custom_call.1} parent=1 // loop_footer
      %s25 = sadd.s32 1, %s21
    $region7: #{tpu_custom_call.1} parent=1 // loop_footer_branch
      %20 = sbr.rel target = $region3
    $region8: #{tpu_custom_call.1} parent=1 // loop_exit
      _
    %852 = vsyncpa [#allocation3], 1
    %s853 = scalar_lea.sflag [#allocation3], 1
    %854 = vsyncpa %s853, 1
    %855 = vsyncpa [#allocation6], 1
    %856 = vsyncpa [#allocation9], 1
    %857 = vsyncpa [#allocation12], 1
    %858 = vsyncpa [#allocation4], 1
    %s859 = scalar_lea.sflag [#allocation4], 1
    %860 = vsyncpa %s859, 1

</llo_original>
